<compile_context>
chip_gen: v7x
topology: tpu7x:2x2x1
jax: 0.10.0
libtpu: 0.0.40
codegen_flags: <defaults>
</compile_context>

<pallas_src>
import math
import functools

import numpy as np
import jax
import jax.numpy as jnp
from jax.experimental import pallas as pl
from jax.experimental.pallas import tpu as pltpu


def _sin_pos_emb_kernel(t_ref, tab_ref, o_ref, *, k: int):
    """out[r, j] = sin( phase[j] + sum_i t[r, i] * W[i, j] )   (sin(x+pi/2) == cos(x))

    t_ref   : (TB, k)      f32  -- k consecutive timesteps packed per output row
    tab_ref : (k+1, KD)    f32  -- rows 0..k-1: lane-masked freq table W, row k: phase
    o_ref   : (TB, KD)          -- KD = k * dim, lane-dense output tile
    """
    emb = tab_ref[k:k + 1, :]                              # (1, KD) phase row
    for i in range(k):                                     # static unroll, k <= 32
        emb = emb + t_ref[:, i:i + 1] * tab_ref[i:i + 1, :]
    o_ref[...] = jnp.sin(emb).astype(o_ref.dtype)


def sinusoidal_pos_emb(timesteps, dim, *, block_rows=None, out_dtype=jnp.float32):
    """Pallas equivalent of SinusoidalPosEmb(dim)(timesteps) -> (B, dim)."""
    assert timesteps.ndim == 1, "timesteps must be a 1-D vector"
    assert dim % 2 == 0, "dim must be even (torch module concatenates sin||cos)"
    assert dim >= 4, "dim must be >= 4 (half-1 appears in the denominator)"
    b = int(timesteps.shape[0])
    half = dim // 2

    # ---- constant tables built once on the host (hoisted out of the kernel) ----
    scale = -math.log(10000.0) / (half - 1)
    freqs = np.exp(np.arange(half, dtype=np.float64) * scale)            # (half,)
    freq_full = np.concatenate([freqs, freqs])                           # (dim,)
    phase_full = np.concatenate(
        [np.zeros(half), np.full(half, 0.5 * np.pi)])                    # (dim,)

    # Lane packing factor: k consecutive timesteps per packed output row.
    k = max(1, 128 // dim)
    kd = k * dim

    # W[i, j] = freq_full[j % dim] if j // dim == i else 0          -> (k, kd)
    w = np.zeros((k, kd), dtype=np.float64)
    for i in range(k):
        w[i, i * dim:(i + 1) * dim] = freq_full
    table = jnp.asarray(
        np.concatenate([w, np.tile(phase_full, k)[None, :]], axis=0),
        dtype=jnp.float32)                                               # (k+1, kd)

    # ---- pack the batch axis (pad to a multiple of k; pad rows see t=0, harmless) ----
    bp = -(-b // k) * k
    t = timesteps.astype(jnp.float32)
    if bp != b:
        t = jnp.pad(t, (0, bp - b))
    rows = bp // k
    t2d = t.reshape(rows, k)

    # ---- tile sizing: ~8 MiB of output per tile amortizes the ~0.35 us/step
    # overhead; double-buffered that is ~16 MiB, inside the 32 MiB scoped-VMEM
    # limit requested below on every generation (v5e/v6e/v7x). ----
    sub = 16 if np.dtype(out_dtype) == np.dtype(jnp.bfloat16) else 8
    if block_rows is None:
        target_bytes = 8 << 20
        block_rows = max(sub, (target_bytes // (kd * 4)) // sub * sub)
    if rows <= block_rows:
        tb = rows
    else:
        tb = block_rows
        nsteps = -(-rows // tb)
        if nsteps % 2 == 1:
            # v7x has 2 TensorCores: prefer an even number of roughly equal
            # "parallel" grid steps (no-op on single-TC v5e/v6e).
            tb = max(sub, (-(-rows // (nsteps + 1)) + sub - 1) // sub * sub)
    grid = (-(-rows // tb),)

    out_packed = pl.pallas_call(
        functools.partial(_sin_pos_emb_kernel, k=k),
        out_shape=jax.ShapeDtypeStruct((rows, kd), out_dtype),
        grid=grid,
        in_specs=[
            pl.BlockSpec((tb, k), lambda i: (i, 0)),         # packed timesteps tile
            pl.BlockSpec((k + 1, kd), lambda i: (0, 0)),     # freq+phase table (const)
        ],
        out_specs=pl.BlockSpec((tb, kd), lambda i: (i, 0)),
        compiler_params=pltpu.CompilerParams(
            dimension_semantics=("parallel",),
            vmem_limit_bytes=32 * 1024 * 1024),
        cost_estimate=pl.CostEstimate(
            flops=2 * rows * kd * k,
            transcendentals=rows * kd,
            bytes_accessed=rows * kd * np.dtype(out_dtype).itemsize
            + bp * 4 + (k + 1) * kd * 4),
    )(t2d, table)

    out = out_packed.reshape(bp, dim)      # zero-cost: packed layout is contiguous
    return out[:b] if bp != b else out


def _reference(timesteps_np, dim):
    """float64 numpy reference of the torch module."""
    half = dim // 2
    emb = np.log(10000.0) / (half - 1)
    emb = np.exp(np.arange(half, dtype=np.float64) * -emb)
    emb = np.asarray(timesteps_np, dtype=np.float64)[:, None] * emb[None, :]
    return np.concatenate([np.sin(emb), np.cos(emb)], axis=-1)


if __name__ == "__main__":
    key = jax.random.PRNGKey(0)

    def check(batch, dim, **kw):
        k_ = jax.random.fold_in(key, batch * 1000 + dim)
        ts = jax.random.randint(k_, (batch,), 0, 1000).astype(jnp.float32)
        out = jax.block_until_ready(sinusoidal_pos_emb(ts, dim, **kw))
        ref = _reference(np.asarray(ts), dim)
        assert out.shape == (batch, dim), out.shape
        # f32 sin/cos with |arg| up to ~1000: argument-reduction differences between
        # the Mosaic lowering / phase-add trick and the float64 reference are ~1e-4
        # here and scale with |t| (see kernel TODO); 5e-3 is comfortably above that.
        assert np.allclose(np.asarray(out), ref, atol=5e-3, rtol=5e-3), \
            f"mismatch vs reference (batch={batch}, dim={dim})"

    check(8, 32)                     # k=4 lane-packed, single tile
    check(128, 32, block_rows=8)     # k=4, gridded multi-tile path (4 even steps)
    check(10, 32)                    # batch not a multiple of k (pad + slice back)
    check(16, 128)                   # k=1 path (dim >= 128, already lane-dense)

    print("KERNEL_OK")
</pallas_src>

<mosaic_0001>
module attributes {stable_mosaic.version = 11 : i64} {
  func.func @_sin_pos_emb_kernel(%arg0: i32, %arg1: memref<2x4xf32, #tpu.memory_space<vmem>>, %arg2: memref<5x128xf32, #tpu.memory_space<vmem>>, %arg3: memref<2x128xf32, #tpu.memory_space<vmem>>) attributes {dimension_semantics = [#tpu.dimension_semantics<parallel>], iteration_bounds = array<i64: 1>, scalar_prefetch = 0 : i64, scratch_operands = 0 : i64, tpu.core_type = #tpu.core_type<tc>, window_params = [{transform_indices = @transform_0, window_bounds = array<i64: 2, 4>}, {pipeline_mode = #tpu.pipeline_mode<synchronous>, transform_indices = @transform_1, window_bounds = array<i64: 5, 128>}, {transform_indices = @transform_2, window_bounds = array<i64: 2, 128>}]} {
    %c4 = arith.constant 4 : index
    %c0 = arith.constant 0 : index
    %0 = vector.load %arg2[%c4, %c0] : memref<5x128xf32, #tpu.memory_space<vmem>>, vector<1x128xf32>
    %c0_0 = arith.constant 0 : index
    %c0_1 = arith.constant 0 : index
    %1 = vector.load %arg1[%c0_0, %c0_1] : memref<2x4xf32, #tpu.memory_space<vmem>>, vector<2x1xf32>
    %c0_2 = arith.constant 0 : index
    %c0_3 = arith.constant 0 : index
    %2 = vector.load %arg2[%c0_2, %c0_3] : memref<5x128xf32, #tpu.memory_space<vmem>>, vector<1x128xf32>
    %3 = vector.broadcast %1 : vector<2x1xf32> to vector<2x128xf32>
    %4 = vector.broadcast %2 : vector<1x128xf32> to vector<2x128xf32>
    %5 = arith.mulf %3, %4 : vector<2x128xf32>
    %6 = vector.broadcast %0 : vector<1x128xf32> to vector<2x128xf32>
    %7 = arith.addf %6, %5 : vector<2x128xf32>
    %c0_4 = arith.constant 0 : index
    %c1 = arith.constant 1 : index
    %8 = vector.load %arg1[%c0_4, %c1] : memref<2x4xf32, #tpu.memory_space<vmem>>, vector<2x1xf32>
    %c1_5 = arith.constant 1 : index
    %c0_6 = arith.constant 0 : index
    %9 = vector.load %arg2[%c1_5, %c0_6] : memref<5x128xf32, #tpu.memory_space<vmem>>, vector<1x128xf32>
    %10 = vector.broadcast %8 : vector<2x1xf32> to vector<2x128xf32>
    %11 = vector.broadcast %9 : vector<1x128xf32> to vector<2x128xf32>
    %12 = arith.mulf %10, %11 : vector<2x128xf32>
    %13 = arith.addf %7, %12 : vector<2x128xf32>
    %c0_7 = arith.constant 0 : index
    %c2 = arith.constant 2 : index
    %14 = vector.load %arg1[%c0_7, %c2] : memref<2x4xf32, #tpu.memory_space<vmem>>, vector<2x1xf32>
    %c2_8 = arith.constant 2 : index
    %c0_9 = arith.constant 0 : index
    %15 = vector.load %arg2[%c2_8, %c0_9] : memref<5x128xf32, #tpu.memory_space<vmem>>, vector<1x128xf32>
    %16 = vector.broadcast %14 : vector<2x1xf32> to vector<2x128xf32>
    %17 = vector.broadcast %15 : vector<1x128xf32> to vector<2x128xf32>
    %18 = arith.mulf %16, %17 : vector<2x128xf32>
    %19 = arith.addf %13, %18 : vector<2x128xf32>
    %c0_10 = arith.constant 0 : index
    %c3 = arith.constant 3 : index
    %20 = vector.load %arg1[%c0_10, %c3] : memref<2x4xf32, #tpu.memory_space<vmem>>, vector<2x1xf32>
    %c3_11 = arith.constant 3 : index
    %c0_12 = arith.constant 0 : index
    %21 = vector.load %arg2[%c3_11, %c0_12] : memref<5x128xf32, #tpu.memory_space<vmem>>, vector<1x128xf32>
    %22 = vector.broadcast %20 : vector<2x1xf32> to vector<2x128xf32>
    %23 = vector.broadcast %21 : vector<1x128xf32> to vector<2x128xf32>
    %24 = arith.mulf %22, %23 : vector<2x128xf32>
    %25 = arith.addf %19, %24 : vector<2x128xf32>
    %26 = math.sin %25 : vector<2x128xf32>
    %c0_13 = arith.constant 0 : index
    %c0_14 = arith.constant 0 : index
    %27 = vector.load %arg3[%c0_13, %c0_14] : memref<2x128xf32, #tpu.memory_space<vmem>>, vector<2x128xf32>
    tpu.vector_store %arg3[%c0_13, %c0_14], %26 {strides = array<i32>} : memref<2x128xf32, #tpu.memory_space<vmem>>, vector<2x128xf32>,
    return
  }
  func.func @transform_0(%arg0: i32) -> (i32, i32) {
    %c0_i32 = arith.constant 0 : i32
    %c0_i32_0 = arith.constant 0 : i32
    return %arg0, %c0_i32 : i32, i32
  }
  func.func @transform_1(%arg0: i32) -> (i32, i32) {
    %c0_i32 = arith.constant 0 : i32
    %c0_i32_0 = arith.constant 0 : i32
    %c0_i32_1 = arith.constant 0 : i32
    return %c0_i32, %c0_i32_0 : i32, i32
  }
  func.func @transform_2(%arg0: i32) -> (i32, i32) {
    %c0_i32 = arith.constant 0 : i32
    %c0_i32_0 = arith.constant 0 : i32
    return %arg0, %c0_i32 : i32, i32
  }
}

</mosaic_0001>

<llo_original>
// kernel: tpu_custom_call.1
$region0: #{tpu_custom_call.1}
  #allocation0 [shape = 'u32[]', space=smem, size = 0x4, offset = 0x4, fixed_abs, tag = 'smem constant byte address 0x4 - core index']
  #allocation1 [shape = 'u32[144,128]{1,0:T(1,128)}', space=vmem, size = 0x12000, scoped, tag = 'internal scratch']
  %s0 = inlined_call_operand.hbm [shape: f32[2,4], index: 0, kind: input, shape index: {}]
  %s1 = inlined_call_operand.hbm [shape: f32[5,128], index: 1, kind: input, shape index: {}]
  %s2 = inlined_call_operand.hbm [shape: f32[2,128], index: 2, kind: output, shape index: {}]
  %s3 = sld [smem:[#allocation0]]
  $region26: #{tpu_custom_call.1} parent=0
    _
  %s5 = ssub.s32 1, %s3
  %s6 = scalar_select 0, %s5, %s3
  $region1: #{tpu_custom_call.1} parent=0
    #allocation2 [shape = 'u8[1024]{0}', space=vmem, size = 0x400, scoped, tag = 'input window, operand 0, single buffered']
    #allocation3 [shape = 's32[1]{0}', space=sflag, size = 0x4, scoped, tag = 'scoped memory for tpu_custom_call.1']
    #allocation4 [shape = 's32[1]{0}', space=sflag, size = 0x4, scoped, tag = 'scoped memory for tpu_custom_call.1']
    #allocation5 [shape = 'u8[4096]{0}', space=vmem, size = 0x1000, scoped, tag = 'input window, operand 1, single buffered']
    #allocation6 [shape = 's32[1]{0}', space=sflag, size = 0x4, scoped, tag = 'scoped memory for tpu_custom_call.1']
    #allocation7 [shape = 'u8[1024]{0}', space=vmem, size = 0x400, scoped, tag = 'output window, operand 0, single buffered']
    %7 = vsyncpa [#allocation3], 0
    %8 = vsyncpa [#allocation6], 0
    %9 = vsyncpa [#allocation4], 0
    // Predicated region
    $region2: #{tpu_custom_call.1} parent=1 // pred_check
      _
    $region3: #{tpu_custom_call.1} parent=1 // pred_check_branch
      %11 = sbr.rel (0) target = $region5
    $region4: #{tpu_custom_call.1} parent=1 // pred_region
      %s13 = ssub.s32 32, 32
      %14 = vsyncadd [#allocation3], %s13
      %s16 = sshll.u32 [#allocation2], 4
      %s17 = int_to_ptr.vmem [resolvable:$true] %s16
      %19 = dma.hbm_to_vmem [thread:$0]  %s0, 32, %s17, [#allocation3]
    $region5: #{tpu_custom_call.1} parent=1 // pred_fallthru
      _
    // Predicated region
    $region6: #{tpu_custom_call.1} parent=1 // pred_check
      _
    $region7: #{tpu_custom_call.1} parent=1 // pred_check_branch
      %21 = sbr.rel (0) target = $region9
    $region8: #{tpu_custom_call.1} parent=1 // pred_region
      %s23 = ssub.s32 128, 128
      %24 = vsyncadd [#allocation6], %s23
      %s26 = sshll.u32 [#allocation5], 4
      %s27 = int_to_ptr.vmem [resolvable:$true] %s26
      %29 = dma.hbm_to_vmem [thread:$0]  %s1, 128, %s27, [#allocation6]
    $region9: #{tpu_custom_call.1} parent=1 // pred_fallthru
      _
    // Predicated region
    $region10: #{tpu_custom_call.1} parent=1 // pred_check
      _
    $region11: #{tpu_custom_call.1} parent=1 // pred_check_branch
      %31 = sbr.rel (0) target = $region13
    $region12: #{tpu_custom_call.1} parent=1 // pred_region
      %32 = dma.done [#allocation3], 32
    $region13: #{tpu_custom_call.1} parent=1 // pred_fallthru
      _
    // Predicated region
    $region14: #{tpu_custom_call.1} parent=1 // pred_check
      _
    $region15: #{tpu_custom_call.1} parent=1 // pred_check_branch
      %34 = sbr.rel (0) target = $region17
    $region16: #{tpu_custom_call.1} parent=1 // pred_region
      %35 = dma.done [#allocation6], 128
    $region17: #{tpu_custom_call.1} parent=1 // pred_fallthru
      _
    %v36 = vld [vmem:[#allocation5 + $0x4] sm:$0x1]
    %v37 = vld [vmem:[#allocation2] sm:$0x3]
    %v38 = vld [vmem:[#allocation5] sm:$0x1]
    %40 = vset.pattern.permute.xlu0 0
    %41 = vperm.xlu0 %40, %v37
    %v42 = vpop.permute.xlu0 %41
    %v44 = vlaneseq
    %v45 = vshrl.u32 %v44, 7
    %v46 = vsub.s32 0, %v45
    %v47 = vrot.slane %v38, %v46
    %v48 = vmul.f32 %v42, %v47
    %v49 = vlaneseq
    %v50 = vshrl.u32 %v49, 7
    %v51 = vsub.s32 0, %v50
    %v52 = vrot.slane %v36, %v51
    %v53 = vadd.f32 %v52, %v48
    %v54 = vld [vmem:[#allocation5 + $0x1] sm:$0x1]
    %55 = vset.pattern.permute.xlu0 1
    %56 = vperm.xlu0 %55, %v37
    %v57 = vpop.permute.xlu0 %56
    %v59 = vlaneseq
    %v60 = vshrl.u32 %v59, 7
    %v61 = vsub.s32 0, %v60
    %v62 = vrot.slane %v54, %v61
    %v63 = vmul.f32 %v57, %v62
    %v64 = vadd.f32 %v53, %v63
    %v65 = vld [vmem:[#allocation5 + $0x2] sm:$0x1]
    %66 = vset.pattern.permute.xlu0 2
    %67 = vperm.xlu0 %66, %v37
    %v68 = vpop.permute.xlu0 %67
    %v70 = vlaneseq
    %v71 = vshrl.u32 %v70, 7
    %v72 = vsub.s32 0, %v71
    %v73 = vrot.slane %v65, %v72
    %v74 = vmul.f32 %v68, %v73
    %v75 = vadd.f32 %v64, %v74
    %v76 = vld [vmem:[#allocation5 + $0x3] sm:$0x1]
    %77 = vset.pattern.permute.xlu0 3
    %78 = vperm.xlu0 %77, %v37
    %v79 = vpop.permute.xlu0 %78
    %v81 = vlaneseq
    %v82 = vshrl.u32 %v81, 7
    %v83 = vsub.s32 0, %v82
    %v84 = vrot.slane %v76, %v83
    %v85 = vmul.f32 %v79, %v84
    %v86 = vadd.f32 %v75, %v85
    %v87 = vand.u32 2147483647, %v86
    %vm88 = vcmp.le.f32.partialorder %v87, 0.7853982
    %vm89 = vcmp.lt.s32.totalorder %v86, 0
    %v90 = vand.u32 %v86, 2139095040
    %v91 = vshrl.u32 %v90, 23
    %v92 = vsub.s32 %v91, 127
    %v93 = vand.u32 2147483647, %v86
    %v94 = vand.u32 %v93, 8388607
    %v95 = vor.u32 %v94, 8388608
    %v96 = vsub.s32 0, %v95
    %v97 = vadd.s32 %v92, 1
    %vm98 = vcmp.gt.s32.totalorder %v97, 0
    %v99 = vsel %vm98, %v97, 0
    %v100 = vshrl.u32 %v99, 5
    %v101 = vand.u32 %v99, 31
    %v102 = vsub.s32 32, %v101
    %v103 = vshrl.u32 683565275, %v102
    %v104 = vshll.u32 683565275, %v101
    %v105 = vshrl.u32 2475754826, %v102
    %v106 = vor.u32 %v104, %v105
    %v107 = vshll.u32 2475754826, %v101
    %v108 = vshrl.u32 2131351028, %v102
    %v109 = vor.u32 %v107, %v108
    %v110 = vshll.u32 2131351028, %v101
    %v111 = vshrl.u32 2102212464, %v102
    %v112 = vor.u32 %v110, %v111
    %v113 = vshll.u32 2102212464, %v101
    %v114 = vshrl.u32 920167782, %v102
    %v115 = vor.u32 %v113, %v114
    %v116 = vshll.u32 920167782, %v101
    %v117 = vshrl.u32 1326507024, %v102
    %v118 = vor.u32 %v116, %v117
    %vm119 = vcmp.lt.s32.totalorder %v100, 1
    %vm120 = vcmp.lt.s32.totalorder %v100, 2
    %vm121 = vcmp.lt.s32.totalorder %v100, 3
    %vm122 = vcmp.lt.s32.totalorder %v100, 4
    %v123 = vsel %vm119, %v103, %v106
    %v124 = vsel %vm122, %v112, 2102212464
    %v125 = vsel %vm121, %v109, %v124
    %v126 = vsel %vm120, %v123, %v125
    %v127 = vsel %vm119, %v106, %v109
    %v128 = vsel %vm122, %v115, 920167782
    %v129 = vsel %vm121, %v112, %v128
    %v130 = vsel %vm120, %v127, %v129
    %v131 = vsel %vm119, %v109, %v112
    %v132 = vsel %vm122, %v118, 1326507024
    %v133 = vsel %vm121, %v115, %v132
    %v134 = vsel %vm120, %v131, %v133
    %v135 = vshll.u32 %v95, 8
    %v136 = vmul.u32.u64.compose %v135, %v134
    %v137 = vextract.low.u32 %v136
    %v138 = vextract.high.u32 %v136
    %v139 = vmul.u32.u64.compose %v135, %v130
    %v140 = vextract.low.u32 %v139
    %v141 = vextract.high.u32 %v139
    %v142 = vmul.u32 %v135, %v126
    %v143 = vadd.s32 %v138, %v140
    %vm144 = vc.u32 %v138, %v140
    %v145 = vadd.s32 %v141, 1
    %v146 = vsel %vm144, %v145, %v141
    %v147 = vadd.s32 %v142, %v146
    %v148 = vadd.s32 %v147, 536870912
    %v149 = vshrl.u32 %v148, 30
    %v150 = vshll.u32 %v149, 30
    %v151 = vsub.s32 %v147, %v150
    %vm152 = vcmp.lt.s32.totalorder %v151, 0
    %v153 = vsub.s32 0, %v151
    %v154 = vsel %vm152, %v153, %v151
    %v155 = vclz %v154
    %v156 = vsub.s32 %v155, 2
    %vm157 = vcmp.gt.s32.totalorder 0, %v156
    %v158 = vsel %vm157, 0, %v156
    %v159 = vsub.s32 32, %v158
    %v160 = vshll.u32 %v151, %v158
    %v161 = vshrl.u32 %v143, %v159
    %v162 = vor.u32 %v160, %v161
    %v163 = vsub.s32 4294967266, %v158
    %v164 = vadd.s32 %v163, 127
    %v165 = vshll.u32 %v164, 23
    %v166 = vor.u32 4788187, %v165
    %v167 = vand.u32 2147483647, %v166
    %v169 = vcvt.s32.f32 %v162
    %v170 = vmul.f32 %v169, %v167
    %v171 = vxor.u32 %v170, 2147483648
    %v172 = vsel %vm89, %v171, %v170
    %v173 = vsub.s32 4, %v149
    %v174 = vsel %vm89, %v173, %v149
    %v175 = vsel %vm88, %v86, %v172
    %v176 = vsel %vm88, 0, %v174
    %v177 = vcosq.f32.pop %v175
    %v178 = vsinq.f32.pop %v175
    %vm179 = vweird.f32 %v86
    %v180 = vadd.s32 %v176, 3
    %v181 = vand.u32 %v180, 3
    %vm182 = vcmp.lt.s32.totalorder %v181, 2
    %vm183 = vcmp.eq.s32.totalorder %v181, 0
    %v184 = vxor.u32 %v178, 2147483648
    %v185 = vsel %vm183, %v177, %v184
    %vm186 = vcmp.eq.s32.totalorder %v181, 2
    %v187 = vxor.u32 %v177, 2147483648
    %v188 = vsel %vm186, %v187, %v178
    %v189 = vsel %vm182, %v185, %v188
    %v190 = vsel %vm179, nan, %v189
    %191 = vst [vmem:[#allocation7] sm:$0x3] %v190
    // Predicated region
    $region18: #{tpu_custom_call.1} parent=1 // pred_check
      _
    $region19: #{tpu_custom_call.1} parent=1 // pred_check_branch
      %193 = sbr.rel (0) target = $region21
    $region20: #{tpu_custom_call.1} parent=1 // pred_region
      %s195 = ssub.s32 32, 32
      %196 = vsyncadd [#allocation4], %s195
      %s198 = sshll.u32 [#allocation7], 4
      %s199 = int_to_ptr.vmem [resolvable:$true] %s198
      %201 = dma.vmem_to_hbm [thread:$0]  %s199, 32, %s2, [#allocation4]
    $region21: #{tpu_custom_call.1} parent=1 // pred_fallthru
      _
    // Predicated region
    $region22: #{tpu_custom_call.1} parent=1 // pred_check
      _
    $region23: #{tpu_custom_call.1} parent=1 // pred_check_branch
      %203 = sbr.rel (0) target = $region25
    $region24: #{tpu_custom_call.1} parent=1 // pred_region
      %204 = dma.done [#allocation4], 32
    $region25: #{tpu_custom_call.1} parent=1 // pred_fallthru
      _
    %205 = vsyncpa [#allocation3], 1
    %206 = vsyncpa [#allocation6], 1
    %207 = vsyncpa [#allocation4], 1

</llo_original>
